<compile_context>
chip_gen: v7x
topology: tpu7x:2x2x1
jax: 0.10.0
libtpu: 0.0.40
codegen_flags: <defaults>
</compile_context>

<pallas_src>
import functools

import jax
import jax.numpy as jnp
from jax import lax
from jax.experimental import pallas as pl
from jax.experimental.pallas import tpu as pltpu


def _round_up(n, m):
    return ((n + m - 1) // m) * m


def _mlp_kernel(n_layer, x_ref, w1_ref, b1_ref, wh_ref, bh_ref, wo_ref, bo_ref,
                out_ref):
    """One batch tile of the whole MLP forward.

    Shapes (as seen by the kernel; all feature dims padded to 128):
      x_ref  : (TB, nIn_p)          compute dtype (bf16 or f32)
      w1_ref : (nIn_p, nNodes_p)    compute dtype   b1_ref : (1, nNodes_p) f32
      wh_ref : (L, nNodes_p, nNodes_p) compute dtype
      bh_ref : (L, 1, nNodes_p)     f32
      wo_ref : (nNodes_p, nOut_p)   compute dtype   bo_ref : (1, nOut_p)   f32
      out_ref: (TB, nOut_p)         f32
    """
    cdt = w1_ref.dtype  # MXU compute dtype (bf16 by default)

    # fc1 + ReLU: MXU matmul in compute dtype, f32 accumulation; bias/ReLU f32.
    h = jnp.dot(x_ref[...], w1_ref[...], preferred_element_type=jnp.float32)
    h = jnp.maximum(h + b1_ref[...], 0.0)

    # Hidden stack: (Linear + ReLU) * n_layer, weights indexed dynamically so
    # large n_layer does not unroll / blow up vreg live ranges.
    def body(l, h):
        hp = jnp.dot(h.astype(cdt), wh_ref[l],
                     preferred_element_type=jnp.float32)
        return jnp.maximum(hp + bh_ref[l], 0.0)

    if n_layer > 0:
        h = lax.fori_loop(0, n_layer, body, h, unroll=(n_layer <= 4))

    # Output layer (no activation); lane-dense store (nOut padded to 128).
    y = jnp.dot(h.astype(cdt), wo_ref[...], preferred_element_type=jnp.float32)
    out_ref[...] = (y + bo_ref[...]).astype(out_ref.dtype)


def mlp_forward(x, params, n_layer, *, compute_dtype=jnp.bfloat16,
                block_batch=256):
    """params: w1 (nInputs,nNodes), b1 (nNodes,), wh (nLayer,nNodes,nNodes),
    bh (nLayer,nNodes), wo (nNodes,nOutputs), bo (nOutputs,).
    Weights already stored transposed as (in, out)."""
    batch, n_in = x.shape
    n_nodes = params["w1"].shape[1]
    n_out = params["wo"].shape[1]

    # Hardware-friendly padded sizes (128-lane / 8-sublane tiles).
    n_in_p = _round_up(n_in, 128)
    n_nodes_p = _round_up(n_nodes, 128)
    n_out_p = _round_up(n_out, 128)
    tb = _round_up(max(8, min(block_batch, _round_up(batch, 8))), 8)
    batch_p = _round_up(batch, tb)

    f32 = jnp.float32

    def pad2(a, r, c):
        return jnp.pad(a, ((0, r - a.shape[0]), (0, c - a.shape[1])))

    # Zero padding keeps the math identical (padded h columns are ReLU(0)=0
    # and feed only zero weight rows). Weight cast to bf16 happens once here.
    xp = pad2(x.astype(f32), batch_p, n_in_p).astype(compute_dtype)
    w1 = pad2(params["w1"].astype(f32), n_in_p, n_nodes_p).astype(compute_dtype)
    wo = pad2(params["wo"].astype(f32), n_nodes_p, n_out_p).astype(compute_dtype)
    b1 = jnp.pad(params["b1"].astype(f32), (0, n_nodes_p - n_nodes)
                 ).reshape(1, n_nodes_p)
    bo = jnp.pad(params["bo"].astype(f32), (0, n_out_p - n_out)
                 ).reshape(1, n_out_p)
    if n_layer > 0:
        wh = jnp.pad(params["wh"].astype(f32),
                     ((0, 0), (0, n_nodes_p - n_nodes),
                      (0, n_nodes_p - n_nodes))).astype(compute_dtype)
        bh = jnp.pad(params["bh"].astype(f32),
                     ((0, 0), (0, n_nodes_p - n_nodes))
                     ).reshape(n_layer, 1, n_nodes_p)
    else:  # dummy (never read; fori_loop trip-count is 0)
        wh = jnp.zeros((1, n_nodes_p, n_nodes_p), compute_dtype)
        bh = jnp.zeros((1, 1, n_nodes_p), f32)

    n_l = wh.shape[0]
    grid = (batch_p // tb,)

    in_specs = [
        pl.BlockSpec((tb, n_in_p), lambda i: (i, 0)),              # x tile
        pl.BlockSpec((n_in_p, n_nodes_p), lambda i: (0, 0)),       # w1 resident
        pl.BlockSpec((1, n_nodes_p), lambda i: (0, 0)),            # b1
        pl.BlockSpec((n_l, n_nodes_p, n_nodes_p), lambda i: (0, 0, 0)),  # wh
        pl.BlockSpec((n_l, 1, n_nodes_p), lambda i: (0, 0, 0)),    # bh
        pl.BlockSpec((n_nodes_p, n_out_p), lambda i: (0, 0)),      # wo
        pl.BlockSpec((1, n_out_p), lambda i: (0, 0)),              # bo
    ]
    out_specs = pl.BlockSpec((tb, n_out_p), lambda i: (i, 0))

    # Rough VMEM budget: resident weights (double-buffered by the pipeline)
    # + double-buffered activation tiles + headroom, capped at 100 MiB.
    weight_bytes = sum(int(a.size) * a.dtype.itemsize
                       for a in (w1, b1, wh, bh, wo, bo))
    io_bytes = 2 * tb * (n_in_p * jnp.dtype(compute_dtype).itemsize
                         + n_out_p * 4)
    vmem_limit = int(min(100 * 1024 * 1024,
                         2 * (weight_bytes + io_bytes) + (8 << 20)))

    out_padded = pl.pallas_call(
        functools.partial(_mlp_kernel, n_layer),
        out_shape=jax.ShapeDtypeStruct((batch_p, n_out_p), jnp.float32),
        grid=grid,
        in_specs=in_specs,
        out_specs=out_specs,
        compiler_params=pltpu.CompilerParams(
            dimension_semantics=("parallel",),
            vmem_limit_bytes=vmem_limit),
    )(xp, w1, b1, wh, bh, wo, bo)

    return out_padded[:batch, :n_out]


def init_params(key, n_inputs, n_outputs, n_layer, n_nodes):
    """Deterministic init mimicking nn.Linear's uniform(-1/sqrt(fan_in), +...)
    scheme. Weights are stored transposed: (in, out)."""
    keys = jax.random.split(key, 6)

    def uni(k, shape, fan_in):
        bound = 1.0 / jnp.sqrt(jnp.float32(fan_in))
        return jax.random.uniform(k, shape, jnp.float32, -bound, bound)

    return {
        "w1": uni(keys[0], (n_inputs, n_nodes), n_inputs),
        "b1": uni(keys[1], (n_nodes,), n_inputs),
        "wh": uni(keys[2], (n_layer, n_nodes, n_nodes), n_nodes),
        "bh": uni(keys[3], (n_layer, n_nodes), n_nodes),
        "wo": uni(keys[4], (n_nodes, n_outputs), n_nodes),
        "bo": uni(keys[5], (n_outputs,), n_nodes),
    }


def mlp_reference(x, params, n_layer, compute_dtype=jnp.float32):
    """Pure-JAX reference; optionally emulates the bf16-MXU/f32-accum path."""
    cdt = compute_dtype

    def dot(a, w):
        return jnp.dot(a.astype(cdt), w.astype(cdt),
                       preferred_element_type=jnp.float32)

    h = jnp.maximum(dot(x, params["w1"]) + params["b1"], 0.0)
    for i in range(n_layer):
        h = jnp.maximum(dot(h, params["wh"][i]) + params["bh"][i], 0.0)
    return dot(h, params["wo"]) + params["bo"]


if __name__ == "__main__":
    # Small shapes consistent with the module's forward.
    batch, n_inputs, n_outputs, n_layer, n_nodes = 8, 16, 4, 2, 32

    key = jax.random.PRNGKey(0)
    k_x, k_p = jax.random.split(key)
    x = jax.random.normal(k_x, (batch, n_inputs), jnp.float32)
    params = init_params(k_p, n_inputs, n_outputs, n_layer, n_nodes)

    # 1) f32 compute path: tight check against the f32 reference (exact module
    #    semantics).
    out_f32 = jax.block_until_ready(
        mlp_forward(x, params, n_layer, compute_dtype=jnp.float32))
    ref_f32 = mlp_reference(x, params, n_layer)
    assert out_f32.shape == (batch, n_outputs)
    assert jnp.allclose(out_f32, ref_f32, atol=1e-5, rtol=1e-5)

    # 2) default bf16-MXU path: check against a bf16-emulating reference
    #    (tight) and the f32 reference (loose).
    out_bf16 = jax.block_until_ready(mlp_forward(x, params, n_layer))
    ref_bf16 = mlp_reference(x, params, n_layer, compute_dtype=jnp.bfloat16)
    assert out_bf16.shape == (batch, n_outputs)
    assert jnp.allclose(out_bf16, ref_bf16, atol=5e-3, rtol=5e-3)
    assert jnp.allclose(out_bf16, ref_f32, atol=5e-2, rtol=5e-2)

    print("KERNEL_OK")
</pallas_src>

<mosaic_0001>
module attributes {stable_mosaic.version = 11 : i64} {
  func.func @_mlp_kernel(%arg0: i32, %arg1: memref<8x128xf32, #tpu.memory_space<vmem>>, %arg2: memref<128x128xf32, #tpu.memory_space<vmem>>, %arg3: memref<1x128xf32, #tpu.memory_space<vmem>>, %arg4: memref<2x128x128xf32, #tpu.memory_space<vmem>>, %arg5: memref<2x1x128xf32, #tpu.memory_space<vmem>>, %arg6: memref<128x128xf32, #tpu.memory_space<vmem>>, %arg7: memref<1x128xf32, #tpu.memory_space<vmem>>, %arg8: memref<8x128xf32, #tpu.memory_space<vmem>>) attributes {dimension_semantics = [#tpu.dimension_semantics<parallel>], iteration_bounds = array<i64: 1>, scalar_prefetch = 0 : i64, scratch_operands = 0 : i64, tpu.core_type = #tpu.core_type<tc>, window_params = [{transform_indices = @transform_0, window_bounds = array<i64: 8, 128>}, {pipeline_mode = #tpu.pipeline_mode<synchronous>, transform_indices = @transform_1, window_bounds = array<i64: 128, 128>}, {pipeline_mode = #tpu.pipeline_mode<synchronous>, transform_indices = @transform_2, window_bounds = array<i64: 1, 128>}, {pipeline_mode = #tpu.pipeline_mode<synchronous>, transform_indices = @transform_3, window_bounds = array<i64: 2, 128, 128>}, {pipeline_mode = #tpu.pipeline_mode<synchronous>, transform_indices = @transform_4, window_bounds = array<i64: 2, 1, 128>}, {pipeline_mode = #tpu.pipeline_mode<synchronous>, transform_indices = @transform_5, window_bounds = array<i64: 128, 128>}, {pipeline_mode = #tpu.pipeline_mode<synchronous>, transform_indices = @transform_6, window_bounds = array<i64: 1, 128>}, {transform_indices = @transform_7, window_bounds = array<i64: 8, 128>}]} {
    %c0 = arith.constant 0 : index
    %c0_0 = arith.constant 0 : index
    %0 = vector.load %arg1[%c0, %c0_0] : memref<8x128xf32, #tpu.memory_space<vmem>>, vector<8x128xf32>
    %c0_1 = arith.constant 0 : index
    %c0_2 = arith.constant 0 : index
    %1 = vector.load %arg2[%c0_1, %c0_2] : memref<128x128xf32, #tpu.memory_space<vmem>>, vector<128x128xf32>
    %cst = arith.constant dense<0.000000e+00> : vector<8x128xf32>
    %2 = tpu.matmul %0, %1, %cst {dimension_numbers = #tpu.dot_dimension_numbers<[1], [0], [0], [1], [0, 0, 1, 1], [], []>} : vector<8x128xf32>, vector<128x128xf32>, vector<8x128xf32> -> vector<8x128xf32>
    %c0_3 = arith.constant 0 : index
    %c0_4 = arith.constant 0 : index
    %3 = vector.load %arg3[%c0_3, %c0_4] : memref<1x128xf32, #tpu.memory_space<vmem>>, vector<1x128xf32>
    %4 = vector.broadcast %3 : vector<1x128xf32> to vector<8x128xf32>
    %5 = arith.addf %2, %4 : vector<8x128xf32>
    %cst_5 = arith.constant 0.000000e+00 : f32
    %6 = vector.broadcast %cst_5 : f32 to vector<8x128xf32>
    %7 = arith.maximumf %5, %6 : vector<8x128xf32>
    %c0_i32 = arith.constant 0 : i32
    %8 = arith.index_cast %c0_i32 : i32 to index
    %c0_6 = arith.constant 0 : index
    %c0_7 = arith.constant 0 : index
    %9 = vector.load %arg4[%8, %c0_6, %c0_7] : memref<2x128x128xf32, #tpu.memory_space<vmem>>, vector<1x128x128xf32>
    %10 = vector.shape_cast %9 : vector<1x128x128xf32> to vector<128x128xf32>
    %cst_8 = arith.constant dense<0.000000e+00> : vector<8x128xf32>
    %11 = tpu.matmul %7, %10, %cst_8 {dimension_numbers = #tpu.dot_dimension_numbers<[1], [0], [0], [1], [0, 0, 1, 1], [], []>} : vector<8x128xf32>, vector<128x128xf32>, vector<8x128xf32> -> vector<8x128xf32>
    %12 = arith.index_cast %c0_i32 : i32 to index
    %c0_9 = arith.constant 0 : index
    %c0_10 = arith.constant 0 : index
    %13 = vector.load %arg5[%12, %c0_9, %c0_10] : memref<2x1x128xf32, #tpu.memory_space<vmem>>, vector<1x1x128xf32>
    %14 = vector.shape_cast %13 : vector<1x1x128xf32> to vector<1x128xf32>
    %15 = vector.broadcast %14 : vector<1x128xf32> to vector<8x128xf32>
    %16 = arith.addf %11, %15 : vector<8x128xf32>
    %cst_11 = arith.constant 0.000000e+00 : f32
    %17 = vector.broadcast %cst_11 : f32 to vector<8x128xf32>
    %18 = arith.maximumf %16, %17 : vector<8x128xf32>
    %c1_i32 = arith.constant 1 : i32
    %19 = arith.index_cast %c1_i32 : i32 to index
    %c0_12 = arith.constant 0 : index
    %c0_13 = arith.constant 0 : index
    %20 = vector.load %arg4[%19, %c0_12, %c0_13] : memref<2x128x128xf32, #tpu.memory_space<vmem>>, vector<1x128x128xf32>
    %21 = vector.shape_cast %20 : vector<1x128x128xf32> to vector<128x128xf32>
    %cst_14 = arith.constant dense<0.000000e+00> : vector<8x128xf32>
    %22 = tpu.matmul %18, %21, %cst_14 {dimension_numbers = #tpu.dot_dimension_numbers<[1], [0], [0], [1], [0, 0, 1, 1], [], []>} : vector<8x128xf32>, vector<128x128xf32>, vector<8x128xf32> -> vector<8x128xf32>
    %23 = arith.index_cast %c1_i32 : i32 to index
    %c0_15 = arith.constant 0 : index
    %c0_16 = arith.constant 0 : index
    %24 = vector.load %arg5[%23, %c0_15, %c0_16] : memref<2x1x128xf32, #tpu.memory_space<vmem>>, vector<1x1x128xf32>
    %25 = vector.shape_cast %24 : vector<1x1x128xf32> to vector<1x128xf32>
    %26 = vector.broadcast %25 : vector<1x128xf32> to vector<8x128xf32>
    %27 = arith.addf %22, %26 : vector<8x128xf32>
    %cst_17 = arith.constant 0.000000e+00 : f32
    %28 = vector.broadcast %cst_17 : f32 to vector<8x128xf32>
    %29 = arith.maximumf %27, %28 : vector<8x128xf32>
    %c2_i32 = arith.constant 2 : i32
    %c0_18 = arith.constant 0 : index
    %c0_19 = arith.constant 0 : index
    %30 = vector.load %arg6[%c0_18, %c0_19] : memref<128x128xf32, #tpu.memory_space<vmem>>, vector<128x128xf32>
    %cst_20 = arith.constant dense<0.000000e+00> : vector<8x128xf32>
    %31 = tpu.matmul %29, %30, %cst_20 {dimension_numbers = #tpu.dot_dimension_numbers<[1], [0], [0], [1], [0, 0, 1, 1], [], []>} : vector<8x128xf32>, vector<128x128xf32>, vector<8x128xf32> -> vector<8x128xf32>
    %c0_21 = arith.constant 0 : index
    %c0_22 = arith.constant 0 : index
    %32 = vector.load %arg7[%c0_21, %c0_22] : memref<1x128xf32, #tpu.memory_space<vmem>>, vector<1x128xf32>
    %33 = vector.broadcast %32 : vector<1x128xf32> to vector<8x128xf32>
    %34 = arith.addf %31, %33 : vector<8x128xf32>
    %c0_23 = arith.constant 0 : index
    %c0_24 = arith.constant 0 : index
    %35 = vector.load %arg8[%c0_23, %c0_24] : memref<8x128xf32, #tpu.memory_space<vmem>>, vector<8x128xf32>
    tpu.vector_store %arg8[%c0_23, %c0_24], %34 {strides = array<i32>} : memref<8x128xf32, #tpu.memory_space<vmem>>, vector<8x128xf32>,
    return
  }
  func.func @transform_0(%arg0: i32) -> (i32, i32) {
    %c0_i32 = arith.constant 0 : i32
    %c0_i32_0 = arith.constant 0 : i32
    return %arg0, %c0_i32 : i32, i32
  }
  func.func @transform_1(%arg0: i32) -> (i32, i32) {
    %c0_i32 = arith.constant 0 : i32
    %c0_i32_0 = arith.constant 0 : i32
    %c0_i32_1 = arith.constant 0 : i32
    return %c0_i32, %c0_i32_0 : i32, i32
  }
  func.func @transform_2(%arg0: i32) -> (i32, i32) {
    %c0_i32 = arith.constant 0 : i32
    %c0_i32_0 = arith.constant 0 : i32
    %c0_i32_1 = arith.constant 0 : i32
    return %c0_i32, %c0_i32_0 : i32, i32
  }
  func.func @transform_3(%arg0: i32) -> (i32, i32, i32) {
    %c0_i32 = arith.constant 0 : i32
    %c0_i32_0 = arith.constant 0 : i32
    %c0_i32_1 = arith.constant 0 : i32
    %c0_i32_2 = arith.constant 0 : i32
    return %c0_i32, %c0_i32_0, %c0_i32_1 : i32, i32, i32
  }
  func.func @transform_4(%arg0: i32) -> (i32, i32, i32) {
    %c0_i32 = arith.constant 0 : i32
    %c0_i32_0 = arith.constant 0 : i32
    %c0_i32_1 = arith.constant 0 : i32
    %c0_i32_2 = arith.constant 0 : i32
    return %c0_i32, %c0_i32_0, %c0_i32_1 : i32, i32, i32
  }
  func.func @transform_5(%arg0: i32) -> (i32, i32) {
    %c0_i32 = arith.constant 0 : i32
    %c0_i32_0 = arith.constant 0 : i32
    %c0_i32_1 = arith.constant 0 : i32
    return %c0_i32, %c0_i32_0 : i32, i32
  }
  func.func @transform_6(%arg0: i32) -> (i32, i32) {
    %c0_i32 = arith.constant 0 : i32
    %c0_i32_0 = arith.constant 0 : i32
    %c0_i32_1 = arith.constant 0 : i32
    return %c0_i32, %c0_i32_0 : i32, i32
  }
  func.func @transform_7(%arg0: i32) -> (i32, i32) {
    %c0_i32 = arith.constant 0 : i32
    %c0_i32_0 = arith.constant 0 : i32
    return %arg0, %c0_i32 : i32, i32
  }
}

</mosaic_0001>

<llo_original>
// kernel: tpu_custom_call.1
$region0: #{tpu_custom_call.1}
  #allocation0 [shape = 'u32[]', space=smem, size = 0x4, offset = 0x4, fixed_abs, tag = 'smem constant byte address 0x4 - core index']
  #allocation1 [shape = 'u32[144,128]{1,0:T(1,128)}', space=vmem, size = 0x12000, scoped, tag = 'internal scratch']
  %s0 = inlined_call_operand.hbm [shape: f32[8,128], index: 0, kind: input, shape index: {}]
  %s1 = inlined_call_operand.hbm [shape: f32[128,128], index: 1, kind: input, shape index: {}]
  %s2 = inlined_call_operand.vmem [shape: f32[1,128], index: 2, kind: input, shape index: {}]
  %s3 = inlined_call_operand.hbm [shape: f32[2,128,128], index: 3, kind: input, shape index: {}]
  %s4 = inlined_call_operand.vmem [shape: f32[2,1,128], index: 4, kind: input, shape index: {}]
  %s5 = inlined_call_operand.hbm [shape: f32[128,128], index: 5, kind: input, shape index: {}]
  %s6 = inlined_call_operand.vmem [shape: f32[1,128], index: 6, kind: input, shape index: {}]
  %s7 = inlined_call_operand.hbm [shape: f32[8,128], index: 7, kind: output, shape index: {}]
  %s8 = sld [smem:[#allocation0]]
  $region54: #{tpu_custom_call.1} parent=0
    _
  %s10 = ssub.s32 1, %s8
  %s11 = scalar_select 0, %s10, %s8
  $region1: #{tpu_custom_call.1} parent=0
    #allocation2 [shape = 'u8[4096]{0}', space=vmem, size = 0x1000, scoped, tag = 'input window, operand 0, single buffered']
    #allocation3 [shape = 's32[1]{0}', space=sflag, size = 0x4, scoped, tag = 'scoped memory for tpu_custom_call.1']
    #allocation4 [shape = 's32[1]{0}', space=sflag, size = 0x4, scoped, tag = 'scoped memory for tpu_custom_call.1']
    #allocation5 [shape = 'u8[65536]{0}', space=vmem, size = 0x10000, scoped, tag = 'input window, operand 1, single buffered']
    #allocation6 [shape = 's32[1]{0}', space=sflag, size = 0x4, scoped, tag = 'scoped memory for tpu_custom_call.1']
    #allocation7 [shape = 'u8[131072]{0}', space=vmem, size = 0x20000, scoped, tag = 'input window, operand 3, single buffered']
    #allocation8 [shape = 'u8[65536]{0}', space=vmem, size = 0x10000, scoped, tag = 'input window, operand 5, single buffered']
    #allocation9 [shape = 's32[1]{0}', space=sflag, size = 0x4, scoped, tag = 'scoped memory for tpu_custom_call.1']
    #allocation10 [shape = 'u8[4096]{0}', space=vmem, size = 0x1000, scoped, tag = 'output window, operand 0, single buffered']
    %12 = vsyncpa [#allocation3], 0
    %13 = vsyncpa [#allocation6], 0
    %14 = vsyncpa [#allocation9], 0
    %15 = vsyncpa [#allocation4], 0
    // Predicated region
    $region2: #{tpu_custom_call.1} parent=1 // pred_check
      _
    $region3: #{tpu_custom_call.1} parent=1 // pred_check_branch
      %17 = sbr.rel (0) target = $region5
    $region4: #{tpu_custom_call.1} parent=1 // pred_region
      %s19 = ssub.s32 128, 128
      %20 = vsyncadd [#allocation3], %s19
      %s22 = sshll.u32 [#allocation2], 4
      %s23 = int_to_ptr.vmem [resolvable:$true] %s22
      %25 = dma.hbm_to_vmem [thread:$0]  %s0, 128, %s23, [#allocation3]
    $region5: #{tpu_custom_call.1} parent=1 // pred_fallthru
      _
    // Predicated region
    $region6: #{tpu_custom_call.1} parent=1 // pred_check
      _
    $region7: #{tpu_custom_call.1} parent=1 // pred_check_branch
      %27 = sbr.rel (0) target = $region9
    $region8: #{tpu_custom_call.1} parent=1 // pred_region
      %s29 = ssub.s32 2048, 2048
      %30 = vsyncadd [#allocation6], %s29
      %s31 = sshll.u32 [#allocation5], 4
      %s32 = int_to_ptr.vmem [resolvable:$true] %s31
      %37 = dma.hbm_to_vmem [thread:$0]  %s1, 2048, %s32, [#allocation6], 128, 128, 8
    $region9: #{tpu_custom_call.1} parent=1 // pred_fallthru
      _
    // Predicated region
    $region10: #{tpu_custom_call.1} parent=1 // pred_check
      _
    $region11: #{tpu_custom_call.1} parent=1 // pred_check_branch
      %39 = sbr.rel (0) target = $region13
    $region12: #{tpu_custom_call.1} parent=1 // pred_region
      _
    $region13: #{tpu_custom_call.1} parent=1 // pred_fallthru
      _
    // Predicated region
    $region14: #{tpu_custom_call.1} parent=1 // pred_check
      _
    $region15: #{tpu_custom_call.1} parent=1 // pred_check_branch
      %41 = sbr.rel (0) target = $region17
    $region16: #{tpu_custom_call.1} parent=1 // pred_region
      %s43 = ssub.s32 4096, 4096
      %44 = vsyncadd [#allocation6], %s43
      %s45 = sshll.u32 [#allocation7], 4
      %s46 = int_to_ptr.vmem [resolvable:$true] %s45
      %51 = dma.hbm_to_vmem [thread:$0]  %s3, 4096, %s46, [#allocation6], 128, 128, 8
    $region17: #{tpu_custom_call.1} parent=1 // pred_fallthru
      _
    // Predicated region
    $region18: #{tpu_custom_call.1} parent=1 // pred_check
      _
    $region19: #{tpu_custom_call.1} parent=1 // pred_check_branch
      %53 = sbr.rel (0) target = $region21
    $region20: #{tpu_custom_call.1} parent=1 // pred_region
      _
    $region21: #{tpu_custom_call.1} parent=1 // pred_fallthru
      _
    // Predicated region
    $region22: #{tpu_custom_call.1} parent=1 // pred_check
      _
    $region23: #{tpu_custom_call.1} parent=1 // pred_check_branch
      %55 = sbr.rel (0) target = $region25
    $region24: #{tpu_custom_call.1} parent=1 // pred_region
      %s57 = ssub.s32 2048, 2048
      %58 = vsyncadd [#allocation9], %s57
      %s59 = sshll.u32 [#allocation8], 4
      %s60 = int_to_ptr.vmem [resolvable:$true] %s59
      %65 = dma.hbm_to_vmem [thread:$0]  %s5, 2048, %s60, [#allocation9], 128, 128, 8
    $region25: #{tpu_custom_call.1} parent=1 // pred_fallthru
      _
    // Predicated region
    $region26: #{tpu_custom_call.1} parent=1 // pred_check
      _
    $region27: #{tpu_custom_call.1} parent=1 // pred_check_branch
      %67 = sbr.rel (0) target = $region29
    $region28: #{tpu_custom_call.1} parent=1 // pred_region
      _
    $region29: #{tpu_custom_call.1} parent=1 // pred_fallthru
      _
    // Predicated region
    $region30: #{tpu_custom_call.1} parent=1 // pred_check
      _
    $region31: #{tpu_custom_call.1} parent=1 // pred_check_branch
      %69 = sbr.rel (0) target = $region33
    $region32: #{tpu_custom_call.1} parent=1 // pred_region
      %70 = dma.done [#allocation3], 128
    $region33: #{tpu_custom_call.1} parent=1 // pred_fallthru
      _
    // Predicated region
    $region34: #{tpu_custom_call.1} parent=1 // pred_check
      _
    $region35: #{tpu_custom_call.1} parent=1 // pred_check_branch
      %72 = sbr.rel (0) target = $region37
    $region36: #{tpu_custom_call.1} parent=1 // pred_region
      %73 = dma.done [#allocation6], 2048
    $region37: #{tpu_custom_call.1} parent=1 // pred_fallthru
      _
    // Predicated region
    $region38: #{tpu_custom_call.1} parent=1 // pred_check
      _
    $region39: #{tpu_custom_call.1} parent=1 // pred_check_branch
      %75 = sbr.rel (0) target = $region41
    $region40: #{tpu_custom_call.1} parent=1 // pred_region
      %76 = dma.done [#allocation6], 4096
    $region41: #{tpu_custom_call.1} parent=1 // pred_fallthru
      _
    // Predicated region
    $region42: #{tpu_custom_call.1} parent=1 // pred_check
      _
    $region43: #{tpu_custom_call.1} parent=1 // pred_check_branch
      %78 = sbr.rel (0) target = $region45
    $region44: #{tpu_custom_call.1} parent=1 // pred_region
      %79 = dma.done [#allocation9], 2048
    $region45: #{tpu_custom_call.1} parent=1 // pred_fallthru
      _
    %v80 = vld [vmem:[#allocation2] sm:$0xff]
    %v81 = vld [vmem:[#allocation5] sm:$0xff]
    %v82 = vld [vmem:[#allocation5 + $0x8] sm:$0xff]
    %v83 = vld [vmem:[#allocation5 + $0x10] sm:$0xff]
    %v84 = vld [vmem:[#allocation5 + $0x18] sm:$0xff]
    %v85 = vld [vmem:[#allocation5 + $0x20] sm:$0xff]
    %v86 = vld [vmem:[#allocation5 + $0x28] sm:$0xff]
    %v87 = vld [vmem:[#allocation5 + $0x30] sm:$0xff]
    %v88 = vld [vmem:[#allocation5 + $0x38] sm:$0xff]
    %v89 = vld [vmem:[#allocation5 + $0x40] sm:$0xff]
    %v90 = vld [vmem:[#allocation5 + $0x48] sm:$0xff]
    %v91 = vld [vmem:[#allocation5 + $0x50] sm:$0xff]
    %v92 = vld [vmem:[#allocation5 + $0x58] sm:$0xff]
    %v93 = vld [vmem:[#allocation5 + $0x60] sm:$0xff]
    %v94 = vld [vmem:[#allocation5 + $0x68] sm:$0xff]
    %v95 = vld [vmem:[#allocation5 + $0x70] sm:$0xff]
    %v96 = vld [vmem:[#allocation5 + $0x78] sm:$0xff]
    %v97 = vld [vmem:[%s2] sm:$0x1]
    %v99 = vlaneseq
    %v100 = vshrl.u32 %v99, 7
    %v101 = vsub.s32 0, %v100
    %v102 = vrot.slane %v97, %v101
    %104 = vmatprep.subr.mxu0 0.0
    %105 = vmatpush1.msra.mxu0 %v81
    %106 = vmatprep.subr.mxu0 0.0
    %107 = vmatpush1.msra.mxu0 %v82
    %108 = vmatprep.subr.mxu0 0.0
    %109 = vmatpush1.msra.mxu0 %v83
    %110 = vmatprep.subr.mxu0 0.0
    %111 = vmatpush1.msra.mxu0 %v84
    %112 = vmatprep.subr.mxu0 0.0
    %113 = vmatpush1.msra.mxu0 %v85
    %114 = vmatprep.subr.mxu0 0.0
    %115 = vmatpush1.msra.mxu0 %v86
    %116 = vmatprep.subr.mxu0 0.0
    %117 = vmatpush1.msra.mxu0 %v87
    %118 = vmatprep.subr.mxu0 0.0
    %119 = vmatpush1.msra.mxu0 %v88
    %120 = vmatprep.subr.mxu0 0.0
    %121 = vmatpush1.msra.mxu0 %v89
    %122 = vmatprep.subr.mxu0 0.0
    %123 = vmatpush1.msra.mxu0 %v90
    %124 = vmatprep.subr.mxu0 0.0
    %125 = vmatpush1.msra.mxu0 %v91
    %126 = vmatprep.subr.mxu0 0.0
    %127 = vmatpush1.msra.mxu0 %v92
    %128 = vmatprep.subr.mxu0 0.0
    %129 = vmatpush1.msra.mxu0 %v93
    %130 = vmatprep.subr.mxu0 0.0
    %131 = vmatpush1.msra.mxu0 %v94
    %132 = vmatprep.subr.mxu0 0.0
    %133 = vmatpush1.msra.mxu0 %v95
    %134 = vmatprep.subr.mxu0 0.0
    %135 = vmatpush1.msra.mxu0 %v96
    %136 = vmatprep.subr.mxu0 0.0
    %137 = vmatpush1.msra.mxu0 0.0
    %138 = vmatprep.subr.mxu0 0.0
    %139 = vmatpush1.msra.mxu0 0.0
    %140 = vmatprep.subr.mxu0 0.0
    %141 = vmatpush1.msra.mxu0 0.0
    %142 = vmatprep.subr.mxu0 0.0
    %143 = vmatpush1.msra.mxu0 0.0
    %144 = vmatprep.subr.mxu0 0.0
    %145 = vmatpush1.msra.mxu0 0.0
    %146 = vmatprep.subr.mxu0 0.0
    %147 = vmatpush1.msra.mxu0 0.0
    %148 = vmatprep.subr.mxu0 0.0
    %149 = vmatpush1.msra.mxu0 0.0
    %150 = vmatprep.subr.mxu0 0.0
    %151 = vmatpush1.msra.mxu0 0.0
    %152 = vmatprep.subr.mxu0 0.0
    %153 = vmatpush1.msra.mxu0 0.0
    %154 = vmatprep.subr.mxu0 0.0
    %155 = vmatpush1.msra.mxu0 0.0
    %156 = vmatprep.subr.mxu0 0.0
    %157 = vmatpush1.msra.mxu0 0.0
    %158 = vmatprep.subr.mxu0 0.0
    %159 = vmatpush1.msra.mxu0 0.0
    %160 = vmatprep.subr.mxu0 0.0
    %161 = vmatpush1.msra.mxu0 0.0
    %162 = vmatprep.subr.mxu0 0.0
    %163 = vmatpush1.msra.mxu0 0.0
    %164 = vmatprep.subr.mxu0 0.0
    %165 = vmatpush1.msra.mxu0 0.0
    %166 = vmatprep.subr.mxu0 0.0
    %167 = vmatpush1.msra.mxu0 0.0
    %168 = vmatprep.mubr.f32.mxu0 0.0
    %169 = vmatmul.mubr.f32.gmra.mrb[0].mxu0 %v80
    %v170 = vpop.f32.mrb[0].mxu0
    %v171 = vadd.f32 %v102, %v170
    %v172 = vpop.f32.mrb[0].mxu0
    %173 = vdwg.mxu0
    %v174 = vmax.f32 %v171, 0.0
    %v175 = vld [vmem:[#allocation7] sm:$0xff]
    %v176 = vld [vmem:[#allocation7 + $0x8] sm:$0xff]
    %v177 = vld [vmem:[#allocation7 + $0x10] sm:$0xff]
    %v178 = vld [vmem:[#allocation7 + $0x18] sm:$0xff]
    %v179 = vld [vmem:[#allocation7 + $0x20] sm:$0xff]
    %v180 = vld [vmem:[#allocation7 + $0x28] sm:$0xff]
    %v181 = vld [vmem:[#allocation7 + $0x30] sm:$0xff]
    %v182 = vld [vmem:[#allocation7 + $0x38] sm:$0xff]
    %v183 = vld [vmem:[#allocation7 + $0x40] sm:$0xff]
    %v184 = vld [vmem:[#allocation7 + $0x48] sm:$0xff]
    %v185 = vld [vmem:[#allocation7 + $0x50] sm:$0xff]
    %v186 = vld [vmem:[#allocation7 + $0x58] sm:$0xff]
    %v187 = vld [vmem:[#allocation7 + $0x60] sm:$0xff]
    %v188 = vld [vmem:[#allocation7 + $0x68] sm:$0xff]
    %v189 = vld [vmem:[#allocation7 + $0x70] sm:$0xff]
    %v190 = vld [vmem:[#allocation7 + $0x78] sm:$0xff]
    %v191 = vld [vmem:[%s4] sm:$0x1]
    %v193 = vlaneseq
    %v194 = vshrl.u32 %v193, 7
    %v195 = vsub.s32 0, %v194
    %v196 = vrot.slane %v191, %v195
    %198 = vmatprep.subr.mxu0 0.0
    %199 = vmatpush1.msra.mxu0 %v175
    %200 = vmatprep.subr.mxu0 0.0
    %201 = vmatpush1.msra.mxu0 %v176
    %202 = vmatprep.subr.mxu0 0.0
    %203 = vmatpush1.msra.mxu0 %v177
    %204 = vmatprep.subr.mxu0 0.0
    %205 = vmatpush1.msra.mxu0 %v178
    %206 = vmatprep.subr.mxu0 0.0
    %207 = vmatpush1.msra.mxu0 %v179
    %208 = vmatprep.subr.mxu0 0.0
    %209 = vmatpush1.msra.mxu0 %v180
    %210 = vmatprep.subr.mxu0 0.0
    %211 = vmatpush1.msra.mxu0 %v181
    %212 = vmatprep.subr.mxu0 0.0
    %213 = vmatpush1.msra.mxu0 %v182
    %214 = vmatprep.subr.mxu0 0.0
    %215 = vmatpush1.msra.mxu0 %v183
    %216 = vmatprep.subr.mxu0 0.0
    %217 = vmatpush1.msra.mxu0 %v184
    %218 = vmatprep.subr.mxu0 0.0
    %219 = vmatpush1.msra.mxu0 %v185
    %220 = vmatprep.subr.mxu0 0.0
    %221 = vmatpush1.msra.mxu0 %v186
    %222 = vmatprep.subr.mxu0 0.0
    %223 = vmatpush1.msra.mxu0 %v187
    %224 = vmatprep.subr.mxu0 0.0
    %225 = vmatpush1.msra.mxu0 %v188
    %226 = vmatprep.subr.mxu0 0.0
    %227 = vmatpush1.msra.mxu0 %v189
    %228 = vmatprep.subr.mxu0 0.0
    %229 = vmatpush1.msra.mxu0 %v190
    %230 = vmatprep.subr.mxu0 0.0
    %231 = vmatpush1.msra.mxu0 0.0
    %232 = vmatprep.subr.mxu0 0.0
    %233 = vmatpush1.msra.mxu0 0.0
    %234 = vmatprep.subr.mxu0 0.0
    %235 = vmatpush1.msra.mxu0 0.0
    %236 = vmatprep.subr.mxu0 0.0
    %237 = vmatpush1.msra.mxu0 0.0
    %238 = vmatprep.subr.mxu0 0.0
    %239 = vmatpush1.msra.mxu0 0.0
    %240 = vmatprep.subr.mxu0 0.0
    %241 = vmatpush1.msra.mxu0 0.0
    %242 = vmatprep.subr.mxu0 0.0
    %243 = vmatpush1.msra.mxu0 0.0
    %244 = vmatprep.subr.mxu0 0.0
    %245 = vmatpush1.msra.mxu0 0.0
    %246 = vmatprep.subr.mxu0 0.0
    %247 = vmatpush1.msra.mxu0 0.0
    %248 = vmatprep.subr.mxu0 0.0
    %249 = vmatpush1.msra.mxu0 0.0
    %250 = vmatprep.subr.mxu0 0.0
    %251 = vmatpush1.msra.mxu0 0.0
    %252 = vmatprep.subr.mxu0 0.0
    %253 = vmatpush1.msra.mxu0 0.0
    %254 = vmatprep.subr.mxu0 0.0
    %255 = vmatpush1.msra.mxu0 0.0
    %256 = vmatprep.subr.mxu0 0.0
    %257 = vmatpush1.msra.mxu0 0.0
    %258 = vmatprep.subr.mxu0 0.0
    %259 = vmatpush1.msra.mxu0 0.0
    %260 = vmatprep.subr.mxu0 0.0
    %261 = vmatpush1.msra.mxu0 0.0
    %262 = vmatprep.mubr.f32.mxu0 0.0
    %263 = vmatmul.mubr.f32.gmra.mrb[0].mxu0 %v174
    %v264 = vpop.f32.mrb[0].mxu0
    %v265 = vadd.f32 %v196, %v264
    %v266 = vpop.f32.mrb[0].mxu0
    %267 = vdwg.mxu0
    %v268 = vmax.f32 %v265, 0.0
    %s269 = scalar_lea.vmem [#allocation7], 128
    %v270 = vld [vmem:[%s269] sm:$0xff]
    %v271 = vld [vmem:[%s269 + $0x8] sm:$0xff]
    %v272 = vld [vmem:[%s269 + $0x10] sm:$0xff]
    %v273 = vld [vmem:[%s269 + $0x18] sm:$0xff]
    %v274 = vld [vmem:[%s269 + $0x20] sm:$0xff]
    %v275 = vld [vmem:[%s269 + $0x28] sm:$0xff]
    %v276 = vld [vmem:[%s269 + $0x30] sm:$0xff]
    %v277 = vld [vmem:[%s269 + $0x38] sm:$0xff]
    %v278 = vld [vmem:[%s269 + $0x40] sm:$0xff]
    %v279 = vld [vmem:[%s269 + $0x48] sm:$0xff]
    %v280 = vld [vmem:[%s269 + $0x50] sm:$0xff]
    %v281 = vld [vmem:[%s269 + $0x58] sm:$0xff]
    %v282 = vld [vmem:[%s269 + $0x60] sm:$0xff]
    %v283 = vld [vmem:[%s269 + $0x68] sm:$0xff]
    %v284 = vld [vmem:[%s269 + $0x70] sm:$0xff]
    %v285 = vld [vmem:[%s269 + $0x78] sm:$0xff]
    %s286 = scalar_lea.vmem %s4, 1
    %v287 = vld [vmem:[%s286] sm:$0x1]
    %v289 = vlaneseq
    %v290 = vshrl.u32 %v289, 7
    %v291 = vsub.s32 0, %v290
    %v292 = vrot.slane %v287, %v291
    %294 = vmatprep.subr.mxu0 0.0
    %295 = vmatpush1.msra.mxu0 %v270
    %296 = vmatprep.subr.mxu0 0.0
    %297 = vmatpush1.msra.mxu0 %v271
    %298 = vmatprep.subr.mxu0 0.0
    %299 = vmatpush1.msra.mxu0 %v272
    %300 = vmatprep.subr.mxu0 0.0
    %301 = vmatpush1.msra.mxu0 %v273
    %302 = vmatprep.subr.mxu0 0.0
    %303 = vmatpush1.msra.mxu0 %v274
    %304 = vmatprep.subr.mxu0 0.0
    %305 = vmatpush1.msra.mxu0 %v275
    %306 = vmatprep.subr.mxu0 0.0
    %307 = vmatpush1.msra.mxu0 %v276
    %308 = vmatprep.subr.mxu0 0.0
    %309 = vmatpush1.msra.mxu0 %v277
    %310 = vmatprep.subr.mxu0 0.0
    %311 = vmatpush1.msra.mxu0 %v278
    %312 = vmatprep.subr.mxu0 0.0
    %313 = vmatpush1.msra.mxu0 %v279
    %314 = vmatprep.subr.mxu0 0.0
    %315 = vmatpush1.msra.mxu0 %v280
    %316 = vmatprep.subr.mxu0 0.0
    %317 = vmatpush1.msra.mxu0 %v281
    %318 = vmatprep.subr.mxu0 0.0
    %319 = vmatpush1.msra.mxu0 %v282
    %320 = vmatprep.subr.mxu0 0.0
    %321 = vmatpush1.msra.mxu0 %v283
    %322 = vmatprep.subr.mxu0 0.0
    %323 = vmatpush1.msra.mxu0 %v284
    %324 = vmatprep.subr.mxu0 0.0
    %325 = vmatpush1.msra.mxu0 %v285
    %326 = vmatprep.subr.mxu0 0.0
    %327 = vmatpush1.msra.mxu0 0.0
    %328 = vmatprep.subr.mxu0 0.0
    %329 = vmatpush1.msra.mxu0 0.0
    %330 = vmatprep.subr.mxu0 0.0
    %331 = vmatpush1.msra.mxu0 0.0
    %332 = vmatprep.subr.mxu0 0.0
    %333 = vmatpush1.msra.mxu0 0.0
    %334 = vmatprep.subr.mxu0 0.0
    %335 = vmatpush1.msra.mxu0 0.0
    %336 = vmatprep.subr.mxu0 0.0
    %337 = vmatpush1.msra.mxu0 0.0
    %338 = vmatprep.subr.mxu0 0.0
    %339 = vmatpush1.msra.mxu0 0.0
    %340 = vmatprep.subr.mxu0 0.0
    %341 = vmatpush1.msra.mxu0 0.0
    %342 = vmatprep.subr.mxu0 0.0
    %343 = vmatpush1.msra.mxu0 0.0
    %344 = vmatprep.subr.mxu0 0.0
    %345 = vmatpush1.msra.mxu0 0.0
    %346 = vmatprep.subr.mxu0 0.0
    %347 = vmatpush1.msra.mxu0 0.0
    %348 = vmatprep.subr.mxu0 0.0
    %349 = vmatpush1.msra.mxu0 0.0
    %350 = vmatprep.subr.mxu0 0.0
    %351 = vmatpush1.msra.mxu0 0.0
    %352 = vmatprep.subr.mxu0 0.0
    %353 = vmatpush1.msra.mxu0 0.0
    %354 = vmatprep.subr.mxu0 0.0
    %355 = vmatpush1.msra.mxu0 0.0
    %356 = vmatprep.subr.mxu0 0.0
    %357 = vmatpush1.msra.mxu0 0.0
    %358 = vmatprep.mubr.f32.mxu0 0.0
    %359 = vmatmul.mubr.f32.gmra.mrb[0].mxu0 %v268
    %v360 = vpop.f32.mrb[0].mxu0
    %v361 = vadd.f32 %v292, %v360
    %v362 = vpop.f32.mrb[0].mxu0
    %363 = vdwg.mxu0
    %v364 = vmax.f32 %v361, 0.0
    %v365 = vld [vmem:[#allocation8] sm:$0xff]
    %v366 = vld [vmem:[#allocation8 + $0x8] sm:$0xff]
    %v367 = vld [vmem:[#allocation8 + $0x10] sm:$0xff]
    %v368 = vld [vmem:[#allocation8 + $0x18] sm:$0xff]
    %v369 = vld [vmem:[#allocation8 + $0x20] sm:$0xff]
    %v370 = vld [vmem:[#allocation8 + $0x28] sm:$0xff]
    %v371 = vld [vmem:[#allocation8 + $0x30] sm:$0xff]
    %v372 = vld [vmem:[#allocation8 + $0x38] sm:$0xff]
    %v373 = vld [vmem:[#allocation8 + $0x40] sm:$0xff]
    %v374 = vld [vmem:[#allocation8 + $0x48] sm:$0xff]
    %v375 = vld [vmem:[#allocation8 + $0x50] sm:$0xff]
    %v376 = vld [vmem:[#allocation8 + $0x58] sm:$0xff]
    %v377 = vld [vmem:[#allocation8 + $0x60] sm:$0xff]
    %v378 = vld [vmem:[#allocation8 + $0x68] sm:$0xff]
    %v379 = vld [vmem:[#allocation8 + $0x70] sm:$0xff]
    %v380 = vld [vmem:[#allocation8 + $0x78] sm:$0xff]
    %v381 = vld [vmem:[%s6] sm:$0x1]
    %v383 = vlaneseq
    %v384 = vshrl.u32 %v383, 7
    %v385 = vsub.s32 0, %v384
    %v386 = vrot.slane %v381, %v385
    %388 = vmatprep.subr.mxu0 0.0
    %389 = vmatpush1.msra.mxu0 %v365
    %390 = vmatprep.subr.mxu0 0.0
    %391 = vmatpush1.msra.mxu0 %v366
    %392 = vmatprep.subr.mxu0 0.0
    %393 = vmatpush1.msra.mxu0 %v367
    %394 = vmatprep.subr.mxu0 0.0
    %395 = vmatpush1.msra.mxu0 %v368
    %396 = vmatprep.subr.mxu0 0.0
    %397 = vmatpush1.msra.mxu0 %v369
    %398 = vmatprep.subr.mxu0 0.0
    %399 = vmatpush1.msra.mxu0 %v370
    %400 = vmatprep.subr.mxu0 0.0
    %401 = vmatpush1.msra.mxu0 %v371
    %402 = vmatprep.subr.mxu0 0.0
    %403 = vmatpush1.msra.mxu0 %v372
    %404 = vmatprep.subr.mxu0 0.0
    %405 = vmatpush1.msra.mxu0 %v373
    %406 = vmatprep.subr.mxu0 0.0
    %407 = vmatpush1.msra.mxu0 %v374
    %408 = vmatprep.subr.mxu0 0.0
    %409 = vmatpush1.msra.mxu0 %v375
    %410 = vmatprep.subr.mxu0 0.0
    %411 = vmatpush1.msra.mxu0 %v376
    %412 = vmatprep.subr.mxu0 0.0
    %413 = vmatpush1.msra.mxu0 %v377
    %414 = vmatprep.subr.mxu0 0.0
    %415 = vmatpush1.msra.mxu0 %v378
    %416 = vmatprep.subr.mxu0 0.0
    %417 = vmatpush1.msra.mxu0 %v379
    %418 = vmatprep.subr.mxu0 0.0
    %419 = vmatpush1.msra.mxu0 %v380
    %420 = vmatprep.subr.mxu0 0.0
    %421 = vmatpush1.msra.mxu0 0.0
    %422 = vmatprep.subr.mxu0 0.0
    %423 = vmatpush1.msra.mxu0 0.0
    %424 = vmatprep.subr.mxu0 0.0
    %425 = vmatpush1.msra.mxu0 0.0
    %426 = vmatprep.subr.mxu0 0.0
    %427 = vmatpush1.msra.mxu0 0.0
    %428 = vmatprep.subr.mxu0 0.0
    %429 = vmatpush1.msra.mxu0 0.0
    %430 = vmatprep.subr.mxu0 0.0
    %431 = vmatpush1.msra.mxu0 0.0
    %432 = vmatprep.subr.mxu0 0.0
    %433 = vmatpush1.msra.mxu0 0.0
    %434 = vmatprep.subr.mxu0 0.0
    %435 = vmatpush1.msra.mxu0 0.0
    %436 = vmatprep.subr.mxu0 0.0
    %437 = vmatpush1.msra.mxu0 0.0
    %438 = vmatprep.subr.mxu0 0.0
    %439 = vmatpush1.msra.mxu0 0.0
    %440 = vmatprep.subr.mxu0 0.0
    %441 = vmatpush1.msra.mxu0 0.0
    %442 = vmatprep.subr.mxu0 0.0
    %443 = vmatpush1.msra.mxu0 0.0
    %444 = vmatprep.subr.mxu0 0.0
    %445 = vmatpush1.msra.mxu0 0.0
    %446 = vmatprep.subr.mxu0 0.0
    %447 = vmatpush1.msra.mxu0 0.0
    %448 = vmatprep.subr.mxu0 0.0
    %449 = vmatpush1.msra.mxu0 0.0
    %450 = vmatprep.subr.mxu0 0.0
    %451 = vmatpush1.msra.mxu0 0.0
    %452 = vmatprep.mubr.f32.mxu0 0.0
    %453 = vmatmul.mubr.f32.gmra.mrb[0].mxu0 %v364
    %v454 = vpop.f32.mrb[0].mxu0
    %v455 = vadd.f32 %v386, %v454
    %v456 = vpop.f32.mrb[0].mxu0
    %457 = vdwg.mxu0
    %458 = vst [vmem:[#allocation10] sm:$0xff] %v455
    // Predicated region
    $region46: #{tpu_custom_call.1} parent=1 // pred_check
      _
    $region47: #{tpu_custom_call.1} parent=1 // pred_check_branch
      %460 = sbr.rel (0) target = $region49
    $region48: #{tpu_custom_call.1} parent=1 // pred_region
      %s462 = ssub.s32 128, 128
      %463 = vsyncadd [#allocation4], %s462
      %s465 = sshll.u32 [#allocation10], 4
      %s466 = int_to_ptr.vmem [resolvable:$true] %s465
      %468 = dma.vmem_to_hbm [thread:$0]  %s466, 128, %s7, [#allocation4]
    $region49: #{tpu_custom_call.1} parent=1 // pred_fallthru
      _
    // Predicated region
    $region50: #{tpu_custom_call.1} parent=1 // pred_check
      _
    $region51: #{tpu_custom_call.1} parent=1 // pred_check_branch
      %470 = sbr.rel (0) target = $region53
    $region52: #{tpu_custom_call.1} parent=1 // pred_region
      %471 = dma.done [#allocation4], 128
    $region53: #{tpu_custom_call.1} parent=1 // pred_fallthru
      _
    %472 = vsyncpa [#allocation3], 1
    %473 = vsyncpa [#allocation6], 1
    %474 = vsyncpa [#allocation9], 1
    %475 = vsyncpa [#allocation4], 1

</llo_original>
